<compile_context>
chip_gen: v6e
topology: v6e:2x2x1
jax: 0.10.0
libtpu: 0.0.40
codegen_flags: <defaults>
</compile_context>

<pallas_src>
import functools

import numpy as np

import jax
import jax.numpy as jnp
from jax import lax
from jax.experimental import pallas as pl
from jax.experimental.pallas import tpu as pltpu


def _round_up(v, m):
    return ((v + m - 1) // m) * m


# ---------------------------------------------------------------------------
# Kernel: one GNN layer = CSR mean-aggregation + linear + (relu | log_softmax)
# Grid: (node_block i, edge_chunk j); j is the reduction ("arbitrary") axis.
# ---------------------------------------------------------------------------
def gnn_layer_kernel(idx_sm, cnt_sm, segl_ref, invdeg_ref, x_hbm, w_ref, b_ref,
                     out_ref, gath_ref, acc_ref, dma_sem, *, last, n_valid_out):
    i = pl.program_id(0)
    j = pl.program_id(1)
    ec = pl.num_programs(1)
    te = gath_ref.shape[0]          # edges per chunk
    tn = out_ref.shape[0]           # destination nodes per block

    @pl.when(j == 0)
    def _init():
        acc_ref[...] = jnp.zeros_like(acc_ref)

    # Number of real (non-padding) edges in this (i, j) chunk (SMEM scalar).
    cnt = cnt_sm[i * ec + j]

    @pl.when(cnt > 0)
    def _gather_and_accumulate():
        base = (i * ec + j) * te

        # Index-driven row gather: one DMA per edge slot from HBM into the
        # VMEM staging buffer. Padding slots have idx == 0 (a real, finite
        # row); their smat column is zero so they contribute nothing.
        def _issue(e, carry):
            src = idx_sm[base + e]
            pltpu.make_async_copy(x_hbm.at[pl.ds(src, 1), :],
                                  gath_ref.at[pl.ds(e, 1), :],
                                  dma_sem).start()
            return carry
        lax.fori_loop(0, te, _issue, 0)

        # Build the segment-sum one-hot while the row DMAs are in flight.
        segl = segl_ref[0]                                        # (1, te)
        row_iota = lax.broadcasted_iota(jnp.int32, (tn, te), 0)
        smat = (row_iota == segl).astype(jnp.float32)             # (tn, te)

        # Drain all issued copies (same size per descriptor).
        def _drain(e, carry):
            pltpu.make_async_copy(x_hbm.at[pl.ds(0, 1), :],
                                  gath_ref.at[pl.ds(e, 1), :],
                                  dma_sem).wait()
            return carry
        lax.fori_loop(0, te, _drain, 0)

        # Segment-sum gathered rows into this block's destination rows (f32).
        acc_ref[...] += jnp.dot(smat, gath_ref[...],
                                preferred_element_type=jnp.float32)

    @pl.when(j == ec - 1)
    def _finalize():
        # Mean aggregation, then the dense linear layer (bf16 MXU, f32 acc).
        agg = acc_ref[...] * invdeg_ref[...]                      # (tn, c_in)
        h = jnp.dot(agg.astype(jnp.bfloat16), w_ref[...],
                    preferred_element_type=jnp.float32) + b_ref[...]
        if last:
            # log_softmax over the real (unpadded) output channels only.
            col = lax.broadcasted_iota(jnp.int32, h.shape, 1)
            valid = col < n_valid_out
            hm = jnp.where(valid, h, jnp.float32(-1e30))
            m = jnp.max(hm, axis=-1, keepdims=True)
            p = jnp.where(valid, jnp.exp(hm - m), 0.0)
            lse = jnp.log(jnp.sum(p, axis=-1, keepdims=True)) + m
            out_ref[...] = (h - lse).astype(out_ref.dtype)
        else:
            out_ref[...] = jnp.maximum(h, 0.0).astype(out_ref.dtype)


def gnn_layer(idx_flat, cnt_flat, segl, inv_deg, x_pad, w_pad, b_pad, *,
              nb, ec, tn, te, n_pad, c_in_pad, c_out_pad, n_valid_out, last):
    kernel = functools.partial(gnn_layer_kernel, last=last,
                               n_valid_out=n_valid_out)
    grid_spec = pltpu.PrefetchScalarGridSpec(
        num_scalar_prefetch=2,                      # idx_flat, cnt_flat -> SMEM
        grid=(nb, ec),
        in_specs=[
            # local destination row per edge slot (lane-major row tiles)
            pl.BlockSpec((1, 1, te), lambda i, j, *_: (i, 0, j)),
            # 1/deg per destination node of this block
            pl.BlockSpec((tn, 1), lambda i, j, *_: (i, 0)),
            # feature matrix stays in HBM; rows are DMA-gathered in-kernel
            pl.BlockSpec(memory_space=pl.ANY),
            # weights (bf16) / bias, full-array blocks
            pl.BlockSpec((c_in_pad, c_out_pad), lambda i, j, *_: (0, 0)),
            pl.BlockSpec((1, c_out_pad), lambda i, j, *_: (0, 0)),
        ],
        out_specs=pl.BlockSpec((tn, c_out_pad), lambda i, j, *_: (i, 0)),
        scratch_shapes=[
            pltpu.VMEM((te, c_in_pad), jnp.float32),   # gathered rows (staging)
            pltpu.VMEM((tn, c_in_pad), jnp.float32),   # f32 accumulator
            pltpu.SemaphoreType.DMA,                   # row-gather DMA sem
        ],
    )
    return pl.pallas_call(
        kernel,
        out_shape=jax.ShapeDtypeStruct((n_pad, c_out_pad), jnp.float32),
        grid_spec=grid_spec,
        compiler_params=pltpu.CompilerParams(
            dimension_semantics=("parallel", "arbitrary")),
    )(idx_flat, cnt_flat, segl, inv_deg, x_pad, w_pad, b_pad)


# ---------------------------------------------------------------------------
# Graph preprocessing (host side, done once and shared by all layers):
# block the CSR edge list by destination-node tile and pad each block to a
# fixed number of edge slots so the kernel grid is static. Also emits the
# per-chunk valid-edge counts used to skip all-padding chunks.
# ---------------------------------------------------------------------------
def prepare_graph(ptr, idx, num_nodes, tn, te):
    ptr_np = np.asarray(ptr).astype(np.int64)
    idx_np = np.asarray(idx).astype(np.int64)

    n_pad = _round_up(max(num_nodes, tn), tn)
    nb = n_pad // tn

    deg = ptr_np[1:] - ptr_np[:-1]                                   # (N,)
    dst = np.repeat(np.arange(num_nodes, dtype=np.int64), deg)       # (E,)

    blk_lo = np.minimum(np.arange(nb) * tn, num_nodes)
    blk_hi = np.minimum((np.arange(nb) + 1) * tn, num_nodes)
    starts = ptr_np[blk_lo]
    ends = ptr_np[blk_hi]
    counts = ends - starts
    epb = _round_up(int(max(counts.max(), 1)), te)                   # edges/block
    ec = epb // te                                                   # edge chunks

    idx_flat = np.zeros((nb * epb,), np.int32)                       # src ids
    segl = np.full((nb, 1, epb), -1, np.int32)                       # local dst
    cnt = np.zeros((nb, ec), np.int32)                               # valid/chunk
    for b in range(nb):
        s, e = int(starts[b]), int(ends[b])
        c = e - s
        if c:
            idx_flat[b * epb:b * epb + c] = idx_np[s:e]
            segl[b, 0, :c] = dst[s:e] - b * tn
        cnt[b, :] = np.clip(c - np.arange(ec) * te, 0, te)

    inv_deg = np.zeros((n_pad, 1), np.float32)
    inv_deg[:num_nodes, 0] = np.where(
        deg > 0, 1.0 / np.maximum(deg, 1), 0.0).astype(np.float32)

    return (jnp.asarray(idx_flat), jnp.asarray(cnt.reshape(-1)),
            jnp.asarray(segl), jnp.asarray(inv_deg), n_pad, nb, epb, ec)


def gnn_forward(x, ptr, idx, weights, biases, *, tn=256, te=512):
    """Full GNN forward (forward_cxg path, num_node = all nodes)."""
    num_nodes = x.shape[0]

    # Tile sizes: tn multiple of 8 (sublanes), te multiple of 128 (lanes).
    tn = _round_up(max(8, min(int(tn), _round_up(num_nodes, 8))), 8)
    te = max(128, _round_up(int(te), 128))

    idx_flat, cnt_flat, segl, inv_deg, n_pad, nb, epb, ec = prepare_graph(
        ptr, idx, num_nodes, tn, te)

    # Pad node features to (n_pad, round_up(C, 128)); f32 through the gather.
    c0 = x.shape[1]
    c0_pad = _round_up(c0, 128)
    h = jnp.zeros((n_pad, c0_pad), jnp.float32)
    h = h.at[:num_nodes, :c0].set(x.astype(jnp.float32))

    n_layers = len(weights)
    for li, (w, b) in enumerate(zip(weights, biases)):
        c_in, c_out = w.shape
        ci_p = _round_up(c_in, 128)
        co_p = _round_up(c_out, 128)
        # Weight cast to bf16 once here (never per grid step); bias stays f32.
        w_pad = (jnp.zeros((ci_p, co_p), jnp.float32)
                 .at[:c_in, :c_out].set(w).astype(jnp.bfloat16))
        b_pad = jnp.zeros((1, co_p), jnp.float32).at[:, :c_out].set(
            b.reshape(1, -1))
        h = gnn_layer(idx_flat, cnt_flat, segl, inv_deg, h, w_pad, b_pad,
                      nb=nb, ec=ec, tn=tn, te=te, n_pad=n_pad,
                      c_in_pad=ci_p, c_out_pad=co_p,
                      n_valid_out=c_out, last=(li == n_layers - 1))

    return h[:num_nodes, :weights[-1].shape[1]]


# ---------------------------------------------------------------------------
# Pure-JAX reference (module semantics) for correctness checking.
# ---------------------------------------------------------------------------
def gnn_forward_ref(x, ptr, idx, weights, biases):
    n = x.shape[0]
    deg = (ptr[1:] - ptr[:-1]).astype(jnp.float32)
    inv_deg = jnp.where(deg > 0, 1.0 / jnp.maximum(deg, 1.0), 0.0)
    seg_ids = jnp.searchsorted(ptr[1:], jnp.arange(idx.shape[0]), side="right")
    h = x
    for li, (w, b) in enumerate(zip(weights, biases)):
        agg = jax.ops.segment_sum(h[idx], seg_ids, num_segments=n)
        agg = agg * inv_deg[:, None]
        h = agg @ w + b
        if li == len(weights) - 1:
            h = jax.nn.log_softmax(h, axis=-1)
        else:
            h = jax.nn.relu(h)
    return h


def init_params(key, in_channels, hidden_channels, out_channels, num_layer):
    dims = [in_channels] + [hidden_channels] * (num_layer - 1) + [out_channels]
    weights, biases = [], []
    for li in range(num_layer):
        key, wk, bk = jax.random.split(key, 3)
        fan_in, fan_out = dims[li], dims[li + 1]
        scale = jnp.sqrt(1.0 / fan_in)
        weights.append(
            jax.random.uniform(wk, (fan_in, fan_out), jnp.float32, -scale, scale))
        biases.append(
            jax.random.uniform(bk, (1, fan_out), jnp.float32, -scale, scale))
    return weights, biases


if __name__ == "__main__":
    # Small synthetic config: 3-layer GNN on a 64-node graph, degree 8.
    # tn=32, te=128 -> grid (2 node blocks, 2 edge chunks) so both grid axes
    # (parallel node axis + edge-chunk reduction) are exercised.
    in_channels, hidden_channels, out_channels, num_layer = 16, 32, 8, 3
    num_nodes, degree = 64, 8

    key = jax.random.PRNGKey(0)
    key, kx, kidx = jax.random.split(key, 3)

    x = jax.random.normal(kx, (num_nodes, in_channels), jnp.float32)
    ptr = jnp.arange(0, degree * num_nodes + 1, degree, dtype=jnp.int32)  # (N+1,)
    idx = jax.random.randint(kidx, (degree * num_nodes,), 0, num_nodes,
                             dtype=jnp.int32)                             # (E,)

    weights, biases = init_params(key, in_channels, hidden_channels,
                                  out_channels, num_layer)

    out = jax.block_until_ready(
        gnn_forward(x, ptr, idx, weights, biases, tn=32, te=128))
    ref = jax.block_until_ready(gnn_forward_ref(x, ptr, idx, weights, biases))

    assert out.shape == (num_nodes, out_channels)
    # Aggregation is f32 end-to-end; only the final linear uses bf16 MXU
    # operands (as does XLA's default f32 matmul path in the reference),
    # so compare with a bf16-level tolerance.
    assert jnp.allclose(out, ref, atol=3e-2, rtol=3e-2), "mismatch vs reference"

    print("KERNEL_OK")
</pallas_src>

<mosaic_0001>
module attributes {stable_mosaic.version = 11 : i64} {
  func.func @gnn_layer_kernel(%arg0: i32, %arg1: i32, %arg2: memref<512xi32, #tpu.memory_space<smem>>, %arg3: memref<4xi32, #tpu.memory_space<smem>>, %arg4: memref<1x1x128xi32, #tpu.memory_space<vmem>>, %arg5: memref<32x1xf32, #tpu.memory_space<vmem>>, %arg6: memref<64x128xf32, #tpu.memory_space<any>>, %arg7: memref<128x128xbf16, #tpu.memory_space<vmem>>, %arg8: memref<1x128xf32, #tpu.memory_space<vmem>>, %arg9: memref<32x128xf32, #tpu.memory_space<vmem>>, %arg10: memref<128x128xf32, #tpu.memory_space<vmem>>, %arg11: memref<32x128xf32, #tpu.memory_space<vmem>>, %arg12: memref<!tpu.dma_semaphore, #tpu.memory_space<semaphore_mem>>) attributes {dimension_semantics = [#tpu.dimension_semantics<parallel>, #tpu.dimension_semantics<arbitrary>], iteration_bounds = array<i64: 2, 2>, scalar_prefetch = 2 : i64, scratch_operands = 3 : i64, tpu.core_type = #tpu.core_type<tc>, window_params = [{transform_indices = @transform_0, window_bounds = array<i64: 1, 1, 128>}, {transform_indices = @transform_1, window_bounds = array<i64: 32, 1>}, {}, {pipeline_mode = #tpu.pipeline_mode<synchronous>, transform_indices = @transform_3, window_bounds = array<i64: 128, 128>}, {pipeline_mode = #tpu.pipeline_mode<synchronous>, transform_indices = @transform_4, window_bounds = array<i64: 1, 128>}, {transform_indices = @transform_5, window_bounds = array<i64: 32, 128>}]} {
    %c0_i32 = arith.constant 0 : i32
    %0 = arith.cmpi eq, %arg1, %c0_i32 : i32
    %1 = arith.extui %0 : i1 to i32
    %c0_i32_0 = arith.constant 0 : i32
    %2 = arith.cmpi ne, %1, %c0_i32_0 : i32
    scf.if %2 {
      %cst = arith.constant 0.000000e+00 : f32
      %13 = vector.broadcast %cst : f32 to vector<32x128xf32>
      %c0 = arith.constant 0 : index
      %c0_4 = arith.constant 0 : index
      %14 = vector.load %arg11[%c0, %c0_4] : memref<32x128xf32, #tpu.memory_space<vmem>>, vector<32x128xf32>
      tpu.vector_store %arg11[%c0, %c0_4], %13 {strides = array<i32>} : memref<32x128xf32, #tpu.memory_space<vmem>>, vector<32x128xf32>,
    } else {
    }
    %c2_i32 = arith.constant 2 : i32
    %3 = arith.muli %arg0, %c2_i32 : i32
    %4 = arith.addi %3, %arg1 : i32
    %5 = arith.index_cast %4 : i32 to index
    %6 = memref.load %arg3[%5] : memref<4xi32, #tpu.memory_space<smem>>
    %c0_i32_1 = arith.constant 0 : i32
    %7 = arith.cmpi sgt, %6, %c0_i32_1 : i32
    %8 = arith.extui %7 : i1 to i32
    %c0_i32_2 = arith.constant 0 : i32
    %9 = arith.cmpi ne, %8, %c0_i32_2 : i32
    scf.if %9 {
      %c2_i32_4 = arith.constant 2 : i32
      %13 = arith.muli %arg0, %c2_i32_4 : i32
      %14 = arith.addi %13, %arg1 : i32
      %c128_i32 = arith.constant 128 : i32
      %15 = arith.muli %14, %c128_i32 : i32
      %c0_i32_5 = arith.constant 0 : i32
      %c128_i32_6 = arith.constant 128 : i32
      %16 = arith.addi %c0_i32_5, %c128_i32_6 : i32
      %c1_i32_7 = arith.constant 1 : i32
      scf.for %arg13 = %c0_i32_5 to %16 step %c1_i32_7  : i32 {
        %30 = arith.addi %15, %arg13 : i32
        %31 = arith.index_cast %30 : i32 to index
        %32 = memref.load %arg2[%31] : memref<512xi32, #tpu.memory_space<smem>>
        %c0_i32_21 = arith.constant 0 : i32
        %33 = tpu.memref_slice %arg6[%32, %c0_i32_21] : memref<64x128xf32, #tpu.memory_space<any>> -> memref<1x128xf32, #tpu.memory_space<any>>
        %c0_i32_22 = arith.constant 0 : i32
        %34 = tpu.memref_slice %arg10[%arg13, %c0_i32_22] : memref<128x128xf32, #tpu.memory_space<vmem>> -> memref<1x128xf32, #tpu.memory_space<vmem>>
        tpu.enqueue_dma source(%33 : memref<1x128xf32, #tpu.memory_space<any>>) target(%34 : memref<1x128xf32, #tpu.memory_space<vmem>>) target_semaphore(%arg12 : memref<!tpu.dma_semaphore, #tpu.memory_space<semaphore_mem>>)
      }
      %c128_i32_8 = arith.constant 128 : i32
      %c0 = arith.constant 0 : index
      %c0_9 = arith.constant 0 : index
      %c0_10 = arith.constant 0 : index
      %17 = vector.load %arg4[%c0, %c0_9, %c0_10] : memref<1x1x128xi32, #tpu.memory_space<vmem>>, vector<1x1x128xi32>
      %18 = vector.shape_cast %17 : vector<1x1x128xi32> to vector<1x128xi32>
      %19 = tpu.iota {dimensions = array<i32: 0>} : vector<32x128xi32>
      %20 = vector.broadcast %18 : vector<1x128xi32> to vector<32x128xi32>
      %21 = arith.cmpi eq, %19, %20 : vector<32x128xi32>
      %22 = arith.extui %21 : vector<32x128xi1> to vector<32x128xi32>
      %23 = arith.sitofp %22 : vector<32x128xi32> to vector<32x128xf32>
      %c0_i32_11 = arith.constant 0 : i32
      %c128_i32_12 = arith.constant 128 : i32
      %24 = arith.addi %c0_i32_11, %c128_i32_12 : i32
      %c1_i32_13 = arith.constant 1 : i32
      scf.for %arg13 = %c0_i32_11 to %24 step %c1_i32_13  : i32 {
        %c0_i32_21 = arith.constant 0 : i32
        %c0_i32_22 = arith.constant 0 : i32
        %30 = tpu.memref_slice %arg6[%c0_i32_21, %c0_i32_22] : memref<64x128xf32, #tpu.memory_space<any>> -> memref<1x128xf32, #tpu.memory_space<any>>
        %c0_i32_23 = arith.constant 0 : i32
        %31 = tpu.memref_slice %arg10[%arg13, %c0_i32_23] : memref<128x128xf32, #tpu.memory_space<vmem>> -> memref<1x128xf32, #tpu.memory_space<vmem>>
        tpu.wait_dma2 semaphore(%arg12 : memref<!tpu.dma_semaphore, #tpu.memory_space<semaphore_mem>>) src(%30 : memref<1x128xf32, #tpu.memory_space<any>>) dst(%31 : memref<1x128xf32, #tpu.memory_space<vmem>>)
      }
      %c128_i32_14 = arith.constant 128 : i32
      %c0_15 = arith.constant 0 : index
      %c0_16 = arith.constant 0 : index
      %25 = vector.load %arg11[%c0_15, %c0_16] : memref<32x128xf32, #tpu.memory_space<vmem>>, vector<32x128xf32>
      %c0_17 = arith.constant 0 : index
      %c0_18 = arith.constant 0 : index
      %26 = vector.load %arg10[%c0_17, %c0_18] : memref<128x128xf32, #tpu.memory_space<vmem>>, vector<128x128xf32>
      %cst = arith.constant dense<0.000000e+00> : vector<32x128xf32>
      %27 = tpu.matmul %23, %26, %cst {dimension_numbers = #tpu.dot_dimension_numbers<[1], [0], [0], [1], [0, 0, 1, 1], [], []>} : vector<32x128xf32>, vector<128x128xf32>, vector<32x128xf32> -> vector<32x128xf32>
      %28 = arith.addf %25, %27 : vector<32x128xf32>
      %c0_19 = arith.constant 0 : index
      %c0_20 = arith.constant 0 : index
      %29 = vector.load %arg11[%c0_19, %c0_20] : memref<32x128xf32, #tpu.memory_space<vmem>>, vector<32x128xf32>
      tpu.vector_store %arg11[%c0_19, %c0_20], %28 {strides = array<i32>} : memref<32x128xf32, #tpu.memory_space<vmem>>, vector<32x128xf32>,
    } else {
    }
    %c1_i32 = arith.constant 1 : i32
    %10 = arith.cmpi eq, %arg1, %c1_i32 : i32
    %11 = arith.extui %10 : i1 to i32
    %c0_i32_3 = arith.constant 0 : i32
    %12 = arith.cmpi ne, %11, %c0_i32_3 : i32
    scf.if %12 {
      %c0 = arith.constant 0 : index
      %c0_4 = arith.constant 0 : index
      %13 = vector.load %arg11[%c0, %c0_4] : memref<32x128xf32, #tpu.memory_space<vmem>>, vector<32x128xf32>
      %c0_5 = arith.constant 0 : index
      %c0_6 = arith.constant 0 : index
      %14 = vector.load %arg5[%c0_5, %c0_6] : memref<32x1xf32, #tpu.memory_space<vmem>>, vector<32x1xf32>
      %15 = vector.broadcast %14 : vector<32x1xf32> to vector<32x128xf32>
      %16 = arith.mulf %13, %15 : vector<32x128xf32>
      %17 = arith.truncf %16 : vector<32x128xf32> to vector<32x128xbf16>
      %c0_7 = arith.constant 0 : index
      %c0_8 = arith.constant 0 : index
      %18 = vector.load %arg7[%c0_7, %c0_8] : memref<128x128xbf16, #tpu.memory_space<vmem>>, vector<128x128xbf16>
      %cst = arith.constant dense<0.000000e+00> : vector<32x128xf32>
      %19 = tpu.matmul %17, %18, %cst {dimension_numbers = #tpu.dot_dimension_numbers<[1], [0], [0], [1], [0, 0, 1, 1], [], []>} : vector<32x128xbf16>, vector<128x128xbf16>, vector<32x128xf32> -> vector<32x128xf32>
      %c0_9 = arith.constant 0 : index
      %c0_10 = arith.constant 0 : index
      %20 = vector.load %arg8[%c0_9, %c0_10] : memref<1x128xf32, #tpu.memory_space<vmem>>, vector<1x128xf32>
      %21 = vector.broadcast %20 : vector<1x128xf32> to vector<32x128xf32>
      %22 = arith.addf %19, %21 : vector<32x128xf32>
      %cst_11 = arith.constant 0.000000e+00 : f32
      %23 = vector.broadcast %cst_11 : f32 to vector<32x128xf32>
      %24 = arith.maximumf %22, %23 : vector<32x128xf32>
      %c0_12 = arith.constant 0 : index
      %c0_13 = arith.constant 0 : index
      %25 = vector.load %arg9[%c0_12, %c0_13] : memref<32x128xf32, #tpu.memory_space<vmem>>, vector<32x128xf32>
      tpu.vector_store %arg9[%c0_12, %c0_13], %24 {strides = array<i32>} : memref<32x128xf32, #tpu.memory_space<vmem>>, vector<32x128xf32>,
    } else {
    }
    return
  }
  func.func @transform_0(%arg0: i32, %arg1: i32, %arg2: memref<512xi32, #tpu.memory_space<smem>>, %arg3: memref<4xi32, #tpu.memory_space<smem>>) -> (i32, i32, i32) {
    %c0_i32 = arith.constant 0 : i32
    %c0_i32_0 = arith.constant 0 : i32
    return %arg0, %c0_i32, %arg1 : i32, i32, i32
  }
  func.func @transform_1(%arg0: i32, %arg1: i32, %arg2: memref<512xi32, #tpu.memory_space<smem>>, %arg3: memref<4xi32, #tpu.memory_space<smem>>) -> (i32, i32) {
    %c0_i32 = arith.constant 0 : i32
    %c0_i32_0 = arith.constant 0 : i32
    return %arg0, %c0_i32 : i32, i32
  }
  func.func @transform_3(%arg0: i32, %arg1: i32, %arg2: memref<512xi32, #tpu.memory_space<smem>>, %arg3: memref<4xi32, #tpu.memory_space<smem>>) -> (i32, i32) {
    %c0_i32 = arith.constant 0 : i32
    %c0_i32_0 = arith.constant 0 : i32
    %c0_i32_1 = arith.constant 0 : i32
    return %c0_i32, %c0_i32_0 : i32, i32
  }
  func.func @transform_4(%arg0: i32, %arg1: i32, %arg2: memref<512xi32, #tpu.memory_space<smem>>, %arg3: memref<4xi32, #tpu.memory_space<smem>>) -> (i32, i32) {
    %c0_i32 = arith.constant 0 : i32
    %c0_i32_0 = arith.constant 0 : i32
    %c0_i32_1 = arith.constant 0 : i32
    return %c0_i32, %c0_i32_0 : i32, i32
  }
  func.func @transform_5(%arg0: i32, %arg1: i32, %arg2: memref<512xi32, #tpu.memory_space<smem>>, %arg3: memref<4xi32, #tpu.memory_space<smem>>) -> (i32, i32) {
    %c0_i32 = arith.constant 0 : i32
    %c0_i32_0 = arith.constant 0 : i32
    return %arg0, %c0_i32 : i32, i32
  }
}

</mosaic_0001>

<llo_original>
// kernel: tpu_custom_call.1
$region0: #{tpu_custom_call.1}
  #allocation0 [shape = 'u32[]', space=smem, size = 0x4, offset = 0x4, fixed_abs, tag = 'smem constant byte address 0x4 - core index']
  #allocation1 [shape = 'u32[144,128]{1,0:T(1,128)}', space=vmem, size = 0x12000, scoped, tag = 'internal scratch']
  #allocation2 [shape = 'f32[128,128]{1,0:T(8,128)}', space=vmem, size = 0x10000, scoped, tag = 'scratch operand']
  #allocation3 [shape = 'f32[32,128]{1,0:T(8,128)}', space=vmem, size = 0x4000, scoped, tag = 'scratch operand']
  #allocation4 [shape = 's32[1]{0}', space=sflag, size = 0x4, scoped, tag = 'scratch operand']
  #allocation5 [shape = 's32[1]{0}', space=sflag, size = 0x4, scoped, tag = 'scoped memory for tpu_custom_call.1']
  #allocation6 [shape = 'u8[2048]{0}', space=smem, size = 0x800, scoped, tag = 'prefetched SMEM operand 0']
  #allocation7 [shape = 'u8[512]{0}', space=smem, size = 0x200, scoped, tag = 'prefetched SMEM operand 1']
  #allocation12 [shape = 's32[]', space=sflag, size = 0x4, offset = 0, fixed_abs, tag = 'sflag constant byte address 0x0 - dummy sync flag']
  %s0 = inlined_call_operand.vmem [shape: s32[512], index: 0, kind: input, shape index: {}]
  %s1 = inlined_call_operand.hbm [shape: s32[4], index: 1, kind: input, shape index: {}]
  %s2 = inlined_call_operand.vmem [shape: s32[2,1,256], index: 2, kind: input, shape index: {}]
  %s3 = inlined_call_operand.vmem [shape: f32[64,1], index: 3, kind: input, shape index: {}]
  %s4 = inlined_call_operand.vmem [shape: f32[64,128], index: 4, kind: input, shape index: {}]
  %s5 = inlined_call_operand.hbm [shape: bf16[128,128], index: 5, kind: input, shape index: {}]
  %s6 = inlined_call_operand.vmem [shape: f32[1,128], index: 6, kind: input, shape index: {}]
  %s7 = inlined_call_operand.hbm [shape: f32[64,128], index: 7, kind: output, shape index: {}]
  %s8 = sld [smem:[#allocation0]]
  $region109: #{tpu_custom_call.1} parent=0
    _
  %s10 = ssub.s32 1, %s8
  %s11 = scalar_select 0, %s10, %s8
  %s12 = sshll.u32 %s0, 4
  %s13 = int_to_ptr.vmem [resolvable:$true] %s12
  %15 = dma.vmem_to_smem %s13, 64, [#allocation6], [#allocation5]
  %17 = dma.hbm_to_smem %s1, 16, [#allocation7], [#allocation5]
  %18 = dma.done [#allocation5], 80
  %19 = sfence
  $region1: #{tpu_custom_call.1} parent=0
    #allocation8 [shape = 'u8[32768]{0}', space=vmem, size = 0x8000, scoped, tag = 'input window, operand 5, single buffered']
    #allocation9 [shape = 's32[2]{0}', space=sflag, size = 0x8, scoped, tag = 'scoped memory for tpu_custom_call.1']
    #allocation10 [shape = 's32[2]{0}', space=sflag, size = 0x8, scoped, tag = 'scoped memory for tpu_custom_call.1']
    #allocation11 [shape = 'u8[32768]{0}', space=vmem, size = 0x8000, scoped, tag = 'output window, operand 0']
    %20 = vsyncpa [#allocation9], 0
    %21 = vsyncpa [#allocation10], 0
    %s22 = scalar_lea.sflag [#allocation10], 1
    %23 = vsyncpa %s22, 0
    loop: start=0, step=1, limit=6
    $region2: #{tpu_custom_call.1} parent=1 // loop_pre_header
      _
    $region3: #{tpu_custom_call.1} parent=1 // loop_header
      %s25 = sphi 0, %s29
      %p26 = scmp.ge.s32.totalorder %s25, 6
      %s32 = sphi 0, %s44
      %s33 = sphi 0, %s40
      %s34 = sphi 0, %s32
      %s35 = sphi 0, %s33
      %s36 = sphi 0, %s34
      %s37 = sphi 0, %s35
      %s49 = sphi 0, %s51
      %s52 = sphi 0, %s49
      %s53 = sphi 0, %s52
      %s69 = sphi 0, %s53
      %s75 = sphi 0, %s77
      %s78 = sphi 0, %s75
      %s79 = sphi 0, %s78
      %s95 = sphi 0, %s79
      %s99 = sphi 0, %s99
      %s101 = sphi 0, %s99
      %s102 = sphi 0, %s101
      %s116 = sphi 0, %s102
      %s120 = sphi 0, %s120
      %s122 = sphi 0, %s120
      %s123 = sphi 0, %s122
      %s137 = sphi 0, %s123
      %s143 = sphi 0, %s145
      %s146 = sphi 0, %s143
      %s147 = sphi 0, %s146
      %s163 = sphi 0, %s147
    $region4: #{tpu_custom_call.1} parent=1 // loop_header_branch
      %28 = sbr.rel (%p26) target = $region8
    $region5: #{tpu_custom_call.1} parent=1 // loop_body
      %s30 = ssub.s32 %s25, 1
      %s31 = ssub.s32 %s25, 2
      %s38 = sadd.s32 1, %s33
      %p39 = scmp.ge.s32.totalorder %s38, 2
      %s40 = scalar_select %p39, 0, %s38
      %s41 = sadd.s32 1, %s32
      %s42 = scalar_select %p39, %s41, %s32
      %p43 = scmp.ge.s32.totalorder %s42, 2
      %s44 = scalar_select %p43, 0, %s42
      %s45 = ssub.s32 %s32, %s44
      %s46 = ssub.s32 %s33, %s40
      %s47 = sor.u32 %s45, %s46
      %p48 = scmp.eq.s32.totalorder %s47, 0
      %s50 = sadd.s32 %s49, 1
      %s51 = scalar_select %p48, %s49, %s50
      %p54 = pneg %p48
      %p55 = scmp.eq.s32.totalorder %s25, 3
      %p56 = por %p54, %p55
      %p57 = scmp.ne.s32.totalorder %s49, %s52
      %p58 = scmp.eq.s32.totalorder %s25, 0
      %p59 = por %p57, %p58
      %p60 = scmp.ne.s32.totalorder %s49, %s52
      %p61 = scmp.eq.s32.totalorder %s30, 3
      %p62 = por %p60, %p61
      %p63 = scmp.ne.s32.totalorder %s52, %s53
      %p64 = scmp.eq.s32.totalorder %s30, 0
      %p65 = por %p63, %p64
      %p66 = scmp.ne.s32.totalorder %s52, %s53
      %p67 = scmp.eq.s32.totalorder %s31, 3
      %p68 = por %p66, %p67
      %p70 = scmp.ne.s32.totalorder %s53, %s69
      %p71 = scmp.eq.s32.totalorder %s31, 0
      %p72 = por %p70, %p71
      %s73 = ssub.s32 %s32, %s44
      %p74 = scmp.eq.s32.totalorder %s73, 0
      %s76 = sadd.s32 %s75, 1
      %s77 = scalar_select %p74, %s75, %s76
      %p80 = pneg %p74
      %p81 = scmp.eq.s32.totalorder %s25, 3
      %p82 = por %p80, %p81
      %p83 = scmp.ne.s32.totalorder %s75, %s78
      %p84 = scmp.eq.s32.totalorder %s25, 0
      %p85 = por %p83, %p84
      %p86 = scmp.ne.s32.totalorder %s75, %s78
      %p87 = scmp.eq.s32.totalorder %s30, 3
      %p88 = por %p86, %p87
      %p89 = scmp.ne.s32.totalorder %s78, %s79
      %p90 = scmp.eq.s32.totalorder %s30, 0
      %p91 = por %p89, %p90
      %p92 = scmp.ne.s32.totalorder %s78, %s79
      %p93 = scmp.eq.s32.totalorder %s31, 3
      %p94 = por %p92, %p93
      %p96 = scmp.ne.s32.totalorder %s79, %s95
      %p97 = scmp.eq.s32.totalorder %s31, 0
      %p98 = por %p96, %p97
      %s100 = sadd.s32 %s99, 1
      %p103 = scmp.eq.s32.totalorder %s25, 3
      %p104 = scmp.ne.s32.totalorder %s99, %s101
      %p105 = scmp.eq.s32.totalorder %s25, 0
      %p106 = por %p104, %p105
      %p107 = scmp.ne.s32.totalorder %s99, %s101
      %p108 = scmp.eq.s32.totalorder %s30, 3
      %p109 = por %p107, %p108
      %p110 = scmp.ne.s32.totalorder %s101, %s102
      %p111 = scmp.eq.s32.totalorder %s30, 0
      %p112 = por %p110, %p111
      %p113 = scmp.ne.s32.totalorder %s101, %s102
      %p114 = scmp.eq.s32.totalorder %s31, 3
      %p115 = por %p113, %p114
      %p117 = scmp.ne.s32.totalorder %s102, %s116
      %p118 = scmp.eq.s32.totalorder %s31, 0
      %p119 = por %p117, %p118
      %s121 = sadd.s32 %s120, 1
      %p124 = scmp.eq.s32.totalorder %s25, 3
      %p125 = scmp.ne.s32.totalorder %s120, %s122
      %p126 = scmp.eq.s32.totalorder %s25, 0
      %p127 = por %p125, %p126
      %p128 = scmp.ne.s32.totalorder %s120, %s122
      %p129 = scmp.eq.s32.totalorder %s30, 3
      %p130 = por %p128, %p129
      %p131 = scmp.ne.s32.totalorder %s122, %s123
      %p132 = scmp.eq.s32.totalorder %s30, 0
      %p133 = por %p131, %p132
      %p134 = scmp.ne.s32.totalorder %s122, %s123
      %p135 = scmp.eq.s32.totalorder %s31, 3
      %p136 = por %p134, %p135
      %p138 = scmp.ne.s32.totalorder %s123, %s137
      %p139 = scmp.eq.s32.totalorder %s31, 0
      %p140 = por %p138, %p139
      %s141 = ssub.s32 %s32, %s44
      %p142 = scmp.eq.s32.totalorder %s141, 0
      %s144 = sadd.s32 %s143, 1
      %s145 = scalar_select %p142, %s143, %s144
      %p148 = pneg %p142
      %p149 = scmp.eq.s32.totalorder %s25, 3
      %p150 = por %p148, %p149
      %p151 = scmp.ne.s32.totalorder %s143, %s146
      %p152 = scmp.eq.s32.totalorder %s25, 0
      %p153 = por %p151, %p152
      %p154 = scmp.ne.s32.totalorder %s143, %s146
      %p155 = scmp.eq.s32.totalorder %s30, 3
      %p156 = por %p154, %p155
      %p157 = scmp.ne.s32.totalorder %s146, %s147
      %p158 = scmp.eq.s32.totalorder %s30, 0
      %p159 = por %p157, %p158
      %p160 = scmp.ne.s32.totalorder %s146, %s147
      %p161 = scmp.eq.s32.totalorder %s31, 3
      %p162 = por %p160, %p161
      %p164 = scmp.ne.s32.totalorder %s147, %s163
      %p165 = scmp.eq.s32.totalorder %s31, 0
      %p166 = por %p164, %p165
      %p167 = scmp.le.s32.totalorder 1, %s25
      %p168 = scmp.lt.s32.totalorder %s25, 5
      %p169 = pnand %p167, %p168
      %p170 = pneg %p169
      // Predicated region
      $region9: #{tpu_custom_call.1} parent=5 // pred_check
        _
      $region10: #{tpu_custom_call.1} parent=5 // pred_check_branch
        %172 = sbr.rel (%p169) target = $region12
      $region11: #{tpu_custom_call.1} parent=5 // pred_region
        %s173 = ssub.s32 %s25, 1
        // Predicated region
        $region13: #{tpu_custom_call.1} parent=11 // pred_check
          %p174 = pneg %p112
        $region14: #{tpu_custom_call.1} parent=11 // pred_check_branch
          %176 = sbr.rel (%p174) target = $region16
        $region15: #{tpu_custom_call.1} parent=11 // pred_region
          %s178 = ssub.s32 1024, 1024
          %179 = vsyncadd [#allocation9], %s178
          %s180 = sshll.u32 [#allocation8], 4
          %s181 = int_to_ptr.vmem [resolvable:$true] %s180
          %186 = dma.hbm_to_vmem [thread:$0]  %s5, 1024, %s181, [#allocation9], 64, 64, 4
        $region16: #{tpu_custom_call.1} parent=11 // pred_fallthru
          _
        // Predicated region
        $region17: #{tpu_custom_call.1} parent=11 // pred_check
          %p187 = pneg %p133
        $region18: #{tpu_custom_call.1} parent=11 // pred_check_branch
          %189 = sbr.rel (%p187) target = $region20
        $region19: #{tpu_custom_call.1} parent=11 // pred_region
          _
        $region20: #{tpu_custom_call.1} parent=11 // pred_fallthru
          _
      $region12: #{tpu_custom_call.1} parent=5 // pred_fallthru
        _
      %p190 = scmp.lt.s32.totalorder %s25, 4
      // Predicated region
      $region21: #{tpu_custom_call.1} parent=5 // pred_check
        %p191 = pneg %p190
      $region22: #{tpu_custom_call.1} parent=5 // pred_check_branch
        %193 = sbr.rel (%p191) target = $region24
      $region23: #{tpu_custom_call.1} parent=5 // pred_region
        // Predicated region
        $region25: #{tpu_custom_call.1} parent=23 // pred_check
          %p194 = pneg %p59
        $region26: #{tpu_custom_call.1} parent=23 // pred_check_branch
          %196 = sbr.rel (%p194) target = $region28
        $region27: #{tpu_custom_call.1} parent=23 // pred_region
          %p197 = scmp.lt.s32.totalorder %s32, 1
          %s198 = scalar_select %p197, %s32, 1
          %p199 = scmp.lt.s32.totalorder %s33, 1
          %s200 = scalar_select %p199, %s33, 1
          %s201 = smul.addr %s198, 2
          %s202 = sadd.s32 %s200, %s201
          %s203 = scalar_lea.vmem %s2, %s202
        $region28: #{tpu_custom_call.1} parent=23 // pred_fallthru
          _
        // Predicated region
        $region29: #{tpu_custom_call.1} parent=23 // pred_check
          %p204 = pneg %p85
        $region30: #{tpu_custom_call.1} parent=23 // pred_check_branch
          %206 = sbr.rel (%p204) target = $region32
        $region31: #{tpu_custom_call.1} parent=23 // pred_region
          %s207 = smul.u32 4, %s32
          %p208 = scmp.lt.s32.totalorder %s207, 7
          %s209 = scalar_select %p208, %s207, 7
          %s210 = smul.addr %s209, 8
          %s211 = scalar_lea.vmem %s3, %s210
          %s212 = smul.u32 4, %s32
        $region32: #{tpu_custom_call.1} parent=23 // pred_fallthru
          _
      $region24: #{tpu_custom_call.1} parent=5 // pred_fallthru
        _
      %p213 = scmp.le.s32.totalorder 1, %s25
      %p214 = scmp.lt.s32.totalorder %s25, 5
      %p215 = pnand %p213, %p214
      %p216 = pneg %p215
      // Predicated region
      $region33: #{tpu_custom_call.1} parent=5 // pred_check
        _
      $region34: #{tpu_custom_call.1} parent=5 // pred_check_branch
        %218 = sbr.rel (%p215) target = $region36
      $region35: #{tpu_custom_call.1} parent=5 // pred_region
        %s219 = ssub.s32 %s25, 1
        // Predicated region
        $region37: #{tpu_custom_call.1} parent=35 // pred_check
          %p220 = pneg %p112
        $region38: #{tpu_custom_call.1} parent=35 // pred_check_branch
          %222 = sbr.rel (%p220) target = $region40
        $region39: #{tpu_custom_call.1} parent=35 // pred_region
          %223 = dma.done [#allocation9], 1024
        $region40: #{tpu_custom_call.1} parent=35 // pred_fallthru
          _
        %p224 = scmp.lt.s32.totalorder %s34, 1
        %s225 = scalar_select %p224, %s34, 1
        %p226 = scmp.lt.s32.totalorder %s35, 1
        %s227 = scalar_select %p226, %s35, 1
        %s228 = smul.addr %s225, 2
        %s229 = sadd.s32 %s227, %s228
        %s230 = scalar_lea.vmem %s2, %s229
        %p231 = pneg %p65
        %p232 = pneg %p62
        %s233 = smul.u32 4, %s34
        %p234 = scmp.lt.s32.totalorder %s233, 7
        %s235 = scalar_select %p234, %s233, 7
        %s236 = smul.addr %s235, 8
        %s237 = scalar_lea.vmem %s3, %s236
        %p238 = pneg %p91
        %p239 = pneg %p88
        %p240 = pneg %p112
        %p241 = pneg %p109
        %p242 = pneg %p133
        %p243 = pneg %p130
        %p244 = pneg %p159
        %p245 = pneg %p156
        %s246 = sand.u32 %s146, 1
        %s247 = scalar_lea.sflag [#allocation10], %s246
        %s248 = sand.u32 %s146, 1
        %s249 = smul.addr %s248, 32
        %s250 = scalar_lea.vmem [#allocation11], %s249
        %p251 = scmp.lt.s32.totalorder %s34, 1
        %s252 = scalar_select %p251, %s34, 1
        %p253 = scmp.lt.s32.totalorder %s35, 1
        %s254 = scalar_select %p253, %s35, 1
        %s255 = smul.addr %s252, 2
        %s256 = sadd.s32 %s254, %s255
        %s257 = scalar_lea.vmem %s2, %s256
        %s258 = smul.u32 4, %s34
        %p259 = scmp.lt.s32.totalorder %s258, 7
        %s260 = scalar_select %p259, %s258, 7
        %s261 = smul.addr %s260, 8
        %s262 = scalar_lea.vmem %s3, %s261
        %s263 = smul.u32 4, %s34
        %s264 = smul.u32 4, %s34
        %p266 = scmp.eq.s32.totalorder %s35, 0
        // Predicated region
        $region41: #{tpu_custom_call.1} parent=35 // pred_check
          %p267 = pneg %p266
        $region42: #{tpu_custom_call.1} parent=35 // pred_check_branch
          %269 = sbr.rel (%p267) target = $region44
        $region43: #{tpu_custom_call.1} parent=35 // pred_region
          %270 = vst [vmem:[#allocation3] sm:$0xff] 0.0
          %271 = vst [vmem:[#allocation3 + $0x8] sm:$0xff] 0.0
          %272 = vst [vmem:[#allocation3 + $0x10] sm:$0xff] 0.0
          %273 = vst [vmem:[#allocation3 + $0x18] sm:$0xff] 0.0
        $region44: #{tpu_custom_call.1} parent=35 // pred_fallthru
          _
        %s274 = smul.u32 %s34, 2
        %s275 = sadd.s32 %s274, %s35
        %s276 = sld [smem:[#allocation7 + %s275]]
        %p277 = scmp.gt.s32.totalorder %s276, 0
        // Predicated region
        $region45: #{tpu_custom_call.1} parent=35 // pred_check
          %p278 = pneg %p277
        $region46: #{tpu_custom_call.1} parent=35 // pred_check_branch
          %280 = sbr.rel (%p278) target = $region48
        $region47: #{tpu_custom_call.1} parent=35 // pred_region
          %s281 = smul.u32 %s275, 128
          loop: start=0, step=1, limit=128
          $region49: #{tpu_custom_call.1} parent=47 // loop_pre_header
            _
          $region50: #{tpu_custom_call.1} parent=47 // loop_header
            %s283 = sphi 0, %s287
            %p284 = scmp.ge.s32.totalorder %s283, 128
          $region51: #{tpu_custom_call.1} parent=47 // loop_header_branch
            %286 = sbr.rel (%p284) target = $region55
          $region52: #{tpu_custom_call.1} parent=47 // loop_body
            %s288 = sadd.s32 %s281, %s283
            %s289 = sld [smem:[#allocation6 + %s288]]
            %s290 = scalar_lea.vmem %s4, %s289
            %s291 = scalar_lea.vmem [#allocation2], %s283
            %p293 = scmp.lt.u32.totalorder 1, 8
            %p294 = pneg %p293
            // Predicated region
            $region56: #{tpu_custom_call.1} parent=52 // pred_check
              _
            $region57: #{tpu_custom_call.1} parent=52 // pred_check_branch
              %296 = sbr.rel (%p293) target = $region59
            $region58: #{tpu_custom_call.1} parent=52 // pred_region
              %s312 = sand.u32 1, 7
              %p313 = scmp.eq.s32.totalorder %s312, 0
              %p314 = pneg %p313
              // Predicated region
              $region71: #{tpu_custom_call.1} parent=58 // pred_check
                _
              $region72: #{tpu_custom_call.1} parent=58 // pred_check_branch
                %316 = sbr.rel (%p313) target = $region74
              $region73: #{tpu_custom_call.1} parent=58 // pred_region
                %s317 = sand.u32 1, 7
                %s318 = ssub.s32 1, %s317
                %s319 = scalar_lea.vmem %s290, %s318
                %s320 = ssub.s32 1, %s317
                %s321 = scalar_lea.vmem %s291, %s320 [#allocation2]
                %s322 = sshll.u32 1, %s317
                %s323 = ssub.s32 %s322, 1
                loop: start=0, step=1, limit=1
                $region75: #{tpu_custom_call.1} parent=73 // loop_pre_header
                  _
                $region76: #{tpu_custom_call.1} parent=73 // loop_header
                  %s325 = sphi 0, %s329
                  %p326 = scmp.ge.s32.totalorder %s325, 1
                  %s330 = sphi %s319, %s319
                  %s331 = sphi %s321, %s321
                $region77: #{tpu_custom_call.1} parent=73 // loop_header_branch
                  %328 = sbr.rel (%p326) target = $region81
                $region78: #{tpu_custom_call.1} parent=73 // loop_body
                  %v332 = vld [vmem:[%s330] sm:%s323]
                  %333 = vst [vmem:[%s331] sm:%s323] %v332
                $region79: #{tpu_custom_call.1} parent=73 // loop_footer
                  %s329 = sadd.s32 1, %s325
                $region80: #{tpu_custom_call.1} parent=73 // loop_footer_branch
                  %324 = sbr.rel target = $region76
                $region81: #{tpu_custom_call.1} parent=73 // loop_exit
                  _
              $region74: #{tpu_custom_call.1} parent=58 // pred_fallthru
                _
            $region59: #{tpu_custom_call.1} parent=52 // pred_fallthru
              _
            // Predicated region
            $region60: #{tpu_custom_call.1} parent=52 // pred_check
              %p297 = pneg %p293
            $region61: #{tpu_custom_call.1} parent=52 // pred_check_branch
              %299 = sbr.rel (%p297) target = $region63
            $region62: #{tpu_custom_call.1} parent=52 // pred_region
              %s300 = sshll.u32 1, 1
              %s301 = ssub.s32 %s300, 1
              loop: start=0, step=1, limit=1
              $region64: #{tpu_custom_call.1} parent=62 // loop_pre_header
                _
              $region65: #{tpu_custom_call.1} parent=62 // loop_header
                %s303 = sphi 0, %s307
                %p304 = scmp.ge.s32.totalorder %s303, 1
                %s308 = sphi %s290, %s290
                %s309 = sphi %s291, %s291
              $region66: #{tpu_custom_call.1} parent=62 // loop_header_branch
                %306 = sbr.rel (%p304) target = $region70
              $region67: #{tpu_custom_call.1} parent=62 // loop_body
                %v310 = vld [vmem:[%s308] sm:%s301]
                %311 = vst [vmem:[%s309] sm:%s301] %v310
              $region68: #{tpu_custom_call.1} parent=62 // loop_footer
                %s307 = sadd.s32 1, %s303
              $region69: #{tpu_custom_call.1} parent=62 // loop_footer_branch
                %302 = sbr.rel target = $region65
              $region70: #{tpu_custom_call.1} parent=62 // loop_exit
                _
            $region63: #{tpu_custom_call.1} parent=52 // pred_fallthru
              _
            // Predicated region
            $region82: #{tpu_custom_call.1} parent=52 // pred_check
              _
            $region83: #{tpu_custom_call.1} parent=52 // pred_check_branch
              %336 = sbr.rel (0) target = $region85
            $region84: #{tpu_custom_call.1} parent=52 // pred_region
              %337 = vsyncadd [#allocation4], 16
            $region85: #{tpu_custom_call.1} parent=52 // pred_fallthru
              _
          $region53: #{tpu_custom_call.1} parent=47 // loop_footer
            %s287 = sadd.s32 1, %s283
          $region54: #{tpu_custom_call.1} parent=47 // loop_footer_branch
            %282 = sbr.rel target = $region50
          $region55: #{tpu_custom_call.1} parent=47 // loop_exit
            _
          %v338 = vld [vmem:[%s257] sm:$0x1]
          %v339 = vlaneseq
          %v340 = vshrl.u32 %v339, 7
          %v341 = vadd.s32 %v340, 8
          %v342 = vadd.s32 %v340, 16
          %v343 = vadd.s32 %v340, 24
          %v344 = vlaneseq
          %v345 = vshrl.u32 %v344, 7
          %v346 = vsub.s32 0, %v345
          %v347 = vrot.slane %v338, %v346
          %vm348 = vcmp.eq.s32.totalorder %v340, %v347
          %vm349 = vcmp.eq.s32.totalorder %v341, %v347
          %vm350 = vcmp.eq.s32.totalorder %v342, %v347
          %vm351 = vcmp.eq.s32.totalorder %v343, %v347
          %v352 = vsel %vm348, 1, 0
          %v353 = vsel %vm349, 1, 0
          %v354 = vsel %vm350, 1, 0
          %v355 = vsel %vm351, 1, 0
          %v356 = vcvt.s32.f32 %v352
          %v357 = vcvt.s32.f32 %v353
          %v358 = vcvt.s32.f32 %v354
          %v359 = vcvt.s32.f32 %v355
          loop: start=0, step=1, limit=128
          $region86: #{tpu_custom_call.1} parent=47 // loop_pre_header
            _
          $region87: #{tpu_custom_call.1} parent=47 // loop_header
            %s361 = sphi 0, %s365
            %p362 = scmp.ge.s32.totalorder %s361, 128
          $region88: #{tpu_custom_call.1} parent=47 // loop_header_branch
            %364 = sbr.rel (%p362) target = $region92
          $region89: #{tpu_custom_call.1} parent=47 // loop_body
            %s366 = smul.u32 1, 1
            %s367 = sshll.u32 %s366, 4
            %368 = dma.done [#allocation4], %s367
          $region90: #{tpu_custom_call.1} parent=47 // loop_footer
            %s365 = sadd.s32 1, %s361
          $region91: #{tpu_custom_call.1} parent=47 // loop_footer_branch
            %360 = sbr.rel target = $region87
          $region92: #{tpu_custom_call.1} parent=47 // loop_exit
            _
          %v369 = vld [vmem:[#allocation3] sm:$0xff]
          %v370 = vld [vmem:[#allocation3 + $0x8] sm:$0xff]
          %v371 = vld [vmem:[#allocation3 + $0x10] sm:$0xff]
          %v372 = vld [vmem:[#allocation3 + $0x18] sm:$0xff]
          %v373 = vld [vmem:[#allocation2] sm:$0xff]
          %v374 = vld [vmem:[#allocation2 + $0x8] sm:$0xff]
          %v375 = vld [vmem:[#allocation2 + $0x10] sm:$0xff]
          %v376 = vld [vmem:[#allocation2 + $0x18] sm:$0xff]
          %v377 = vld [vmem:[#allocation2 + $0x20] sm:$0xff]
          %v378 = vld [vmem:[#allocation2 + $0x28] sm:$0xff]
          %v379 = vld [vmem:[#allocation2 + $0x30] sm:$0xff]
          %v380 = vld [vmem:[#allocation2 + $0x38] sm:$0xff]
          %v381 = vld [vmem:[#allocation2 + $0x40] sm:$0xff]
          %v382 = vld [vmem:[#allocation2 + $0x48] sm:$0xff]
          %v383 = vld [vmem:[#allocation2 + $0x50] sm:$0xff]
          %v384 = vld [vmem:[#allocation2 + $0x58] sm:$0xff]
          %v385 = vld [vmem:[#allocation2 + $0x60] sm:$0xff]
          %v386 = vld [vmem:[#allocation2 + $0x68] sm:$0xff]
          %v387 = vld [vmem:[#allocation2 + $0x70] sm:$0xff]
          %v388 = vld [vmem:[#allocation2 + $0x78] sm:$0xff]
          %389 = vmatprep.subr.mxu0 0.0
          %390 = vmatpush1.msra.mxu0 %v388
          %391 = vmatprep.subr.mxu0 0.0
          %392 = vmatpush1.msra.mxu0 %v387
          %393 = vmatprep.subr.mxu0 0.0
          %394 = vmatpush1.msra.mxu0 %v386
          %395 = vmatprep.subr.mxu0 0.0
          %396 = vmatpush1.msra.mxu0 %v385
          %397 = vmatprep.subr.mxu0 0.0
          %398 = vmatpush1.msra.mxu0 %v384
          %399 = vmatprep.subr.mxu0 0.0
          %400 = vmatpush1.msra.mxu0 %v383
          %401 = vmatprep.subr.mxu0 0.0
          %402 = vmatpush1.msra.mxu0 %v382
          %403 = vmatprep.subr.mxu0 0.0
          %404 = vmatpush1.msra.mxu0 %v381
          %405 = vmatprep.subr.mxu0 0.0
          %406 = vmatpush1.msra.mxu0 %v380
          %407 = vmatprep.subr.mxu0 0.0
          %408 = vmatpush1.msra.mxu0 %v379
          %409 = vmatprep.subr.mxu0 0.0
          %410 = vmatpush1.msra.mxu0 %v378
          %411 = vmatprep.subr.mxu0 0.0
          %412 = vmatpush1.msra.mxu0 %v377
          %413 = vmatprep.subr.mxu0 0.0
          %414 = vmatpush1.msra.mxu0 %v376
          %415 = vmatprep.subr.mxu0 0.0
          %416 = vmatpush1.msra.mxu0 %v375
          %417 = vmatprep.subr.mxu0 0.0
          %418 = vmatpush1.msra.mxu0 %v374
          %419 = vmatprep.subr.mxu0 0.0
          %420 = vmatpush1.msra.mxu0 %v373
          %421 = vmatprep.subr.mxu0 0.0
          %422 = vmatpush2.msra.mxu0 0.0
          %423 = vmatprep.subr.mxu0 0.0
          %424 = vmatpush2.msra.mxu0 0.0
          %425 = vmatprep.subr.mxu0 0.0
          %426 = vmatpush2.msra.mxu0 0.0
          %427 = vmatprep.subr.mxu0 0.0
          %428 = vmatpush2.msra.mxu0 0.0
          %429 = vmatprep.subr.mxu0 0.0
          %430 = vmatpush2.msra.mxu0 0.0
          %431 = vmatprep.subr.mxu0 0.0
          %432 = vmatpush2.msra.mxu0 0.0
          %433 = vmatprep.subr.mxu0 0.0
          %434 = vmatpush2.msra.mxu0 0.0
          %435 = vmatprep.subr.mxu0 0.0
          %436 = vmatpush2.msra.mxu0 0.0
          %437 = vmatprep.subr.mxu0 0.0
          %438 = vmatpush2.msra.mxu0 0.0
          %439 = vmatprep.subr.mxu0 0.0
          %440 = vmatpush2.msra.mxu0 0.0
          %441 = vmatprep.subr.mxu0 0.0
          %442 = vmatpush2.msra.mxu0 0.0
          %443 = vmatprep.subr.mxu0 0.0
          %444 = vmatpush2.msra.mxu0 0.0
          %445 = vmatprep.subr.mxu0 0.0
          %446 = vmatpush2.msra.mxu0 0.0
          %447 = vmatprep.subr.mxu0 0.0
          %448 = vmatpush2.msra.mxu0 0.0
          %449 = vmatprep.subr.mxu0 0.0
          %450 = vmatpush2.msra.mxu0 0.0
          %451 = vmatprep.subr.mxu0 0.0
          %452 = vmatpush2.msra.mxu0 0.0
          %453 = vmatprep.mubr.f32.mxu0 0.0
          %454 = vmatmul.mubr.f32.gmra.mxu0 %v356
          %v455 = vpop.f32.mrf.mxu0
          %v456 = vadd.f32 0.0, %v455
          %v457 = vpop.f32.mrf.mxu0
          %458 = vmatprep.mubr.f32.mxu0 0.0
          %459 = vmatmul.mubr.f32.gmra.mxu0 %v357
          %v460 = vpop.f32.mrf.mxu0
          %v461 = vadd.f32 0.0, %v460
          %v462 = vpop.f32.mrf.mxu0
          %463 = vmatprep.mubr.f32.mxu0 0.0
          %464 = vmatmul.mubr.f32.gmra.mxu0 %v358
          %v465 = vpop.f32.mrf.mxu0
          %v466 = vadd.f32 0.0, %v465
          %v467 = vpop.f32.mrf.mxu0
          %468 = vmatprep.mubr.f32.mxu0 0.0
          %469 = vmatmul.mubr.f32.gmra.mxu0 %v359
          %v470 = vpop.f32.mrf.mxu0
          %v471 = vadd.f32 0.0, %v470
          %v472 = vpop.f32.mrf.mxu0
          %473 = vdwg.mxu0
          %v474 = vadd.f32 %v369, %v456
          %v475 = vadd.f32 %v370, %v461
          %v476 = vadd.f32 %v371, %v466
          %v477 = vadd.f32 %v372, %v471
          %478 = vst [vmem:[#allocation3] sm:$0xff] %v474
          %479 = vst [vmem:[#allocation3 + $0x8] sm:$0xff] %v475
          %480 = vst [vmem:[#allocation3 + $0x10] sm:$0xff] %v476
          %481 = vst [vmem:[#allocation3 + $0x18] sm:$0xff] %v477
        $region48: #{tpu_custom_call.1} parent=35 // pred_fallthru
          _
        %p482 = scmp.eq.s32.totalorder %s35, 1
        // Predicated region
        $region93: #{tpu_custom_call.1} parent=35 // pred_check
          %p483 = pneg %p482
        $region94: #{tpu_custom_call.1} parent=35 // pred_check_branch
          %485 = sbr.rel (%p483) target = $region96
        $region95: #{tpu_custom_call.1} parent=35 // pred_region
          %v486 = vld [vmem:[#allocation3] sm:$0xff]
          %v487 = vld [vmem:[#allocation3 + $0x8] sm:$0xff]
          %v488 = vld [vmem:[#allocation3 + $0x10] sm:$0xff]
          %v489 = vld [vmem:[#allocation3 + $0x18] sm:$0xff]
          %v490 = vld [vmem:[%s262] sm:$0xff]
          %v491 = vld [vmem:[%s262 + $0x8] sm:$0xff]
          %v492 = vld [vmem:[%s262 + $0x10] sm:$0xff]
          %v493 = vld [vmem:[%s262 + $0x18] sm:$0xff]
          %495 = vset.pattern.permute.xlu0 0
          %496 = vperm.xlu0 %495, %v490
          %v497 = vpop.permute.xlu0 %496
          %500 = vset.pattern.permute.xlu0 0
          %501 = vperm.xlu0 %500, %v491
          %v502 = vpop.permute.xlu0 %501
          %505 = vset.pattern.permute.xlu0 0
          %506 = vperm.xlu0 %505, %v492
          %v507 = vpop.permute.xlu0 %506
          %510 = vset.pattern.permute.xlu0 0
          %511 = vperm.xlu0 %510, %v493
          %v512 = vpop.permute.xlu0 %511
          %v514 = vmul.f32 %v486, %v497
          %v515 = vmul.f32 %v487, %v502
          %v516 = vmul.f32 %v488, %v507
          %v517 = vmul.f32 %v489, %v512
          %v518 = vpack.c.bf16 %v515, %v514
          %v519 = vpack.c.bf16 %v517, %v516
          %v520 = vld [vmem:[#allocation8] sm:$0xf]
          %v521 = vld [vmem:[#allocation8 + $0x4] sm:$0xf]
          %v522 = vld [vmem:[#allocation8 + $0x8] sm:$0xf]
          %v523 = vld [vmem:[#allocation8 + $0xc] sm:$0xf]
          %v524 = vld [vmem:[#allocation8 + $0x10] sm:$0xf]
          %v525 = vld [vmem:[#allocation8 + $0x14] sm:$0xf]
          %v526 = vld [vmem:[#allocation8 + $0x18] sm:$0xf]
          %v527 = vld [vmem:[#allocation8 + $0x1c] sm:$0xf]
          %v528 = vld [vmem:[#allocation8 + $0x20] sm:$0xf]
          %v529 = vld [vmem:[#allocation8 + $0x24] sm:$0xf]
          %v530 = vld [vmem:[#allocation8 + $0x28] sm:$0xf]
          %v531 = vld [vmem:[#allocation8 + $0x2c] sm:$0xf]
          %v532 = vld [vmem:[#allocation8 + $0x30] sm:$0xf]
          %v533 = vld [vmem:[#allocation8 + $0x34] sm:$0xf]
          %v534 = vld [vmem:[#allocation8 + $0x38] sm:$0xf]
          %v535 = vld [vmem:[#allocation8 + $0x3c] sm:$0xf]
          %v536 = vld [vmem:[%s6] sm:$0x1]
          %v538 = vlaneseq
          %v539 = vshrl.u32 %v538, 7
          %v540 = vsub.s32 0, %v539
          %v541 = vrot.slane %v536, %v540
          %v559 = vunpack.c.l.b16 %v520
          %v560 = vunpack.c.l.b16 %v521
          %v561 = vunpack.c.l.b16 %v522
          %v562 = vunpack.c.l.b16 %v523
          %v563 = vunpack.c.l.b16 %v524
          %v564 = vunpack.c.l.b16 %v525
          %v565 = vunpack.c.l.b16 %v526
          %v566 = vunpack.c.l.b16 %v527
          %v567 = vunpack.c.l.b16 %v528
          %v568 = vunpack.c.l.b16 %v529
          %v569 = vunpack.c.l.b16 %v530
          %v570 = vunpack.c.l.b16 %v531
          %v571 = vunpack.c.l.b16 %v532
          %v572 = vunpack.c.l.b16 %v533
          %v573 = vunpack.c.l.b16 %v534
          %v574 = vunpack.c.l.b16 %v535
          %v575 = vpack.c.b16 %v560, %v559
          %v576 = vpack.c.b16 %v562, %v561
          %v577 = vpack.c.b16 %v564, %v563
          %v578 = vpack.c.b16 %v566, %v565
          %v579 = vpack.c.b16 %v568, %v567
          %v580 = vpack.c.b16 %v570, %v569
          %v581 = vpack.c.b16 %v572, %v571
          %v582 = vpack.c.b16 %v574, %v573
          %591 = vmatprep.subr.bf16.mxu0 0
          %592 = vmatpush1.bf16.msra.mxu0 %v582
          %593 = vmatprep.subr.bf16.mxu0 0
          %594 = vmatpush1.bf16.msra.mxu0 %v581
          %595 = vmatprep.subr.bf16.mxu0 0
          %596 = vmatpush1.bf16.msra.mxu0 %v580
          %597 = vmatprep.subr.bf16.mxu0 0
          %598 = vmatpush1.bf16.msra.mxu0 %v579
          %599 = vmatprep.subr.bf16.mxu0 0
          %600 = vmatpush1.bf16.msra.mxu0 %v578
          %601 = vmatprep.subr.bf16.mxu0 0
          %602 = vmatpush1.bf16.msra.mxu0 %v577
          %603 = vmatprep.subr.bf16.mxu0 0
          %604 = vmatpush1.bf16.msra.mxu0 %v576
          %605 = vmatprep.subr.bf16.mxu0 0
          %606 = vmatpush1.bf16.msra.mxu0 %v575
          %607 = vmatprep.subr.bf16.mxu0 0
          %608 = vmatpush2.bf16.msra.mxu0 0
          %609 = vmatprep.subr.bf16.mxu0 0
          %610 = vmatpush2.bf16.msra.mxu0 0
          %611 = vmatprep.subr.bf16.mxu0 0
          %612 = vmatpush2.bf16.msra.mxu0 0
          %613 = vmatprep.subr.bf16.mxu0 0
          %614 = vmatpush2.bf16.msra.mxu0 0
          %615 = vmatprep.subr.bf16.mxu0 0
          %616 = vmatpush2.bf16.msra.mxu0 0
          %617 = vmatprep.subr.bf16.mxu0 0
          %618 = vmatpush2.bf16.msra.mxu0 0
          %619 = vmatprep.subr.bf16.mxu0 0
          %620 = vmatpush2.bf16.msra.mxu0 0
          %621 = vmatprep.subr.bf16.mxu0 0
          %622 = vmatpush2.bf16.msra.mxu0 0
          %623 = vmatprep.mubr.bf16.mxu0 0
          %624 = vmatmul.mubr.bf16.gmra.mxu0 %v518
          %v625 = vpop.f32.mrf.mxu0
          %v626 = vadd.f32 %v541, %v625
          %v627 = vpop.f32.mrf.mxu0
          %v628 = vpop.f32.mrf.mxu0
          %v629 = vadd.f32 %v541, %v628
          %v630 = vpop.f32.mrf.mxu0
          %631 = vmatprep.mubr.bf16.mxu0 0
          %632 = vmatmul.mubr.bf16.gmra.mxu0 %v519
          %v633 = vpop.f32.mrf.mxu0
          %v634 = vadd.f32 %v541, %v633
          %v635 = vpop.f32.mrf.mxu0
          %v636 = vpop.f32.mrf.mxu0
          %v637 = vadd.f32 %v541, %v636
          %v638 = vpop.f32.mrf.mxu0
          %639 = vdwg.mxu0
          %v640 = vmax.f32 %v626, 0.0
          %v641 = vmax.f32 %v629, 0.0
          %v642 = vmax.f32 %v634, 0.0
          %v643 = vmax.f32 %v637, 0.0
          %644 = vst [vmem:[%s250] sm:$0xff] %v640
          %645 = vst [vmem:[%s250 + $0x8] sm:$0xff] %v641
          %646 = vst [vmem:[%s250 + $0x10] sm:$0xff] %v642
          %647 = vst [vmem:[%s250 + $0x18] sm:$0xff] %v643
        $region96: #{tpu_custom_call.1} parent=35 // pred_fallthru
          _
        %s648 = sand.u32 %s146, 1
        %s649 = scalar_lea.sflag [#allocation10], %s648
        %s650 = sand.u32 %s146, 1
        %s651 = smul.addr %s650, 32
        %s652 = scalar_lea.vmem [#allocation11], %s651
        // Predicated region
        $region97: #{tpu_custom_call.1} parent=35 // pred_check
          %p653 = pneg %p156
        $region98: #{tpu_custom_call.1} parent=35 // pred_check_branch
          %655 = sbr.rel (%p653) target = $region100
        $region99: #{tpu_custom_call.1} parent=35 // pred_region
          %s656 = smul.u32 4, %s34
          %s658 = ssub.s32 512, 512
          %659 = vsyncadd %s649, %s658
          %s660 = smul.addr %s656, 128
          %s661 = scalar_lea.hbm %s7, %s660
          %s662 = sshll.u32 %s652, 4
          %s663 = int_to_ptr.vmem [resolvable:$true] %s662
          %668 = dma.vmem_to_hbm [thread:$0]  %s663, 512, %s661, %s649, 128, 128, 8
        $region100: #{tpu_custom_call.1} parent=35 // pred_fallthru
          _
      $region36: #{tpu_custom_call.1} parent=5 // pred_fallthru
        _
      %p669 = scmp.le.s32.totalorder 2, %s25
      // Predicated region
      $region101: #{tpu_custom_call.1} parent=5 // pred_check
        %p670 = pneg %p669
      $region102: #{tpu_custom_call.1} parent=5 // pred_check_branch
        %672 = sbr.rel (%p670) target = $region104
      $region103: #{tpu_custom_call.1} parent=5 // pred_region
        %s673 = ssub.s32 %s25, 2
        // Predicated region
        $region105: #{tpu_custom_call.1} parent=103 // pred_check
          %p674 = pneg %p162
        $region106: #{tpu_custom_call.1} parent=103 // pred_check_branch
          %676 = sbr.rel (%p674) target = $region108
        $region107: #{tpu_custom_call.1} parent=103 // pred_region
          %s677 = sand.u32 %s147, 1
          %s678 = scalar_lea.sflag [#allocation10], %s677
          %s679 = sand.u32 %s147, 1
          %s680 = smul.addr %s679, 32
          %s681 = scalar_lea.vmem [#allocation11], %s680
          %682 = dma.done %s678, 512
        $region108: #{tpu_custom_call.1} parent=103 // pred_fallthru
          _
      $region104: #{tpu_custom_call.1} parent=5 // pred_fallthru
        _
    $region6: #{tpu_custom_call.1} parent=1 // loop_footer
      %s29 = sadd.s32 1, %s25
    $region7: #{tpu_custom_call.1} parent=1 // loop_footer_branch
      %24 = sbr.rel target = $region3
    $region8: #{tpu_custom_call.1} parent=1 // loop_exit
      _
    %683 = vsyncpa [#allocation9], 1
    %s684 = scalar_lea.sflag [#allocation9], 1
    %685 = vsyncpa %s684, 1
    %686 = vsyncpa [#allocation10], 1
    %s687 = scalar_lea.sflag [#allocation10], 1
    %688 = vsyncpa %s687, 1
  %689 = vsyncmov [#allocation4]
  %s690 = vpop.sfrf %689
  %p691 = scmp.eq.s32.totalorder %s690, 0
  %p692 = pneg %p691
  %694 = shalt.err (%p692)

</llo_original>
